<compile_context>
chip_gen: v7x
topology: tpu7x:2x2x1
jax: 0.10.0
libtpu: 0.0.40
codegen_flags: <defaults>
</compile_context>

<pallas_src>
import functools

import jax
import jax.numpy as jnp
from jax.experimental import pallas as pl
from jax.experimental.pallas import tpu as pltpu

IGNORE_INDEX = 255


def _round_up(x, m):
    return ((x + m - 1) // m) * m


def _make_ce_kernel(num_pixels, tile_p, nj_half, need_mask):
    """Kernel for one (batch, core-half, pixel-tile) grid step."""

    def kernel(pred_ref, lab_ref, loss_ref, cnt_ref, acc_ref):
        hh = pl.program_id(1)
        j = pl.program_id(2)

        @pl.when(j == 0)
        def _():
            acc_ref[...] = jnp.zeros_like(acc_ref)

        x = pred_ref[0].astype(jnp.float32)       # (C, TILE_P) classes on sublanes
        lab = lab_ref[0]                          # (1, TILE_P) int32, pixels on lanes

        # numerically stable log-sum-exp over the class (sublane) axis
        m = jnp.max(x, axis=0, keepdims=True)                  # (1, TILE_P)
        lse = m + jnp.log(jnp.sum(jnp.exp(x - m), axis=0, keepdims=True))

        # pick the target-class logit via a one-hot over the class axis
        cls = jax.lax.broadcasted_iota(jnp.int32, x.shape, 0)  # (C, TILE_P)
        picked = jnp.sum(jnp.where(cls == lab, x, 0.0), axis=0, keepdims=True)

        valid = lab != IGNORE_INDEX                             # (1, TILE_P)
        if need_mask:
            # tail-of-array / duplicated-block mask, computed from the
            # UNclamped global block index (no HBM padding of the logits).
            jg = hh * nj_half + j
            lane = jax.lax.broadcasted_iota(jnp.int32, (1, tile_p), 1)
            in_bounds = (jg * tile_p + lane) < num_pixels
            valid = jnp.logical_and(valid, in_bounds)

        # Fused accumulator: row 0 = per-pixel loss, row 1 = valid count.
        # jnp.where (not multiply) so garbage/NaN in masked-out tail lanes
        # can never leak into the accumulator.
        sub = jax.lax.broadcasted_iota(jnp.int32, (2, tile_p), 0)
        vals = jnp.where(sub == 0, lse - picked, 1.0)           # (2, TILE_P)
        acc_ref[...] = acc_ref[...] + jnp.where(valid, vals, 0.0)

        @pl.when(j == nj_half - 1)
        def _():
            acc = acc_ref[...]
            loss_tot = jnp.sum(acc[0:1, :], axis=1, keepdims=True)   # (1, 1)
            cnt_tot = jnp.sum(acc[1:2, :], axis=1, keepdims=True)    # (1, 1)
            loss_ref[...] = jnp.broadcast_to(loss_tot, loss_ref.shape)
            cnt_ref[...] = jnp.broadcast_to(cnt_tot, cnt_ref.shape)

    return kernel


@functools.partial(jax.jit, static_argnames=("tile_pixels",))
def deeplab_loss(pred, gt, *, tile_pixels=32768):
    """pred: (B, C, H, W) float (f32 or bf16) logits; gt: (B, 1, H, W) int labels."""
    b, c, h, w = pred.shape
    p = h * w

    # Free reshapes -- no transpose, no copy, native NCHW layout.
    pred3 = pred.reshape(b, c, p)
    gt3 = gt.reshape(b, 1, p).astype(jnp.int32)   # int32 labels, cheap HBM traffic

    # Pixel tile: multiple of 128, capped by request, array size and an ~8 MiB
    # (dtype-aware) logits block so double-buffering fits on v5e/v6e/v7x.
    itemsize = jnp.dtype(pred.dtype).itemsize
    vmem_cap = max(128, ((8 * 1024 * 1024) // (itemsize * c)) // 128 * 128)
    tile_p = max(128, min(tile_pixels, vmem_cap, _round_up(p, 128)))
    nj = pl.cdiv(p, tile_p)

    # Split the pixel axis across 2 TensorCores (v7x megacore); sequential on
    # 1-TC chips.  If nj is odd the extra block is clamped + fully masked.
    n_core = 2 if nj >= 2 else 1
    nj_half = pl.cdiv(nj, n_core)
    need_mask = (n_core * nj_half * tile_p) != p

    # Explicit VMEM limit: double-buffered logits + labels + padded scratch.
    block_bytes = c * tile_p * itemsize
    need = 2 * block_bytes + 2 * tile_p * 4 + 8 * tile_p * 4 + (1 << 20)
    vmem_limit = int(min(max(32 << 20, 2 * need), 48 << 20))

    def in_map(bi, hh, j):
        return (bi, 0, jnp.minimum(hh * nj_half + j, nj - 1))

    def out_map(bi, hh, j):
        return (bi, hh, 0, 0)

    loss_part, cnt_part = pl.pallas_call(
        _make_ce_kernel(p, tile_p, nj_half, need_mask),
        out_shape=(jax.ShapeDtypeStruct((b, n_core, 8, 128), jnp.float32),
                   jax.ShapeDtypeStruct((b, n_core, 8, 128), jnp.float32)),
        grid_spec=pltpu.PrefetchScalarGridSpec(
            num_scalar_prefetch=0,
            grid=(b, n_core, nj_half),
            in_specs=[
                pl.BlockSpec((1, c, tile_p), in_map),
                pl.BlockSpec((1, 1, tile_p), in_map),
            ],
            out_specs=[
                pl.BlockSpec((1, 1, 8, 128), out_map),
                pl.BlockSpec((1, 1, 8, 128), out_map),
            ],
            scratch_shapes=[
                pltpu.VMEM((2, tile_p), jnp.float32),  # fused loss/count accumulator
            ],
        ),
        compiler_params=pltpu.CompilerParams(
            dimension_semantics=("parallel", "parallel", "arbitrary"),
            vmem_limit_bytes=vmem_limit),
    )(pred3, gt3)

    # reduction='mean' over non-ignored targets (NaN if all ignored, as torch).
    loss_sum = jnp.sum(loss_part[:, :, 0, 0])
    cnt_sum = jnp.sum(cnt_part[:, :, 0, 0])
    return loss_sum / cnt_sum


def _reference_loss(pred, gt):
    """Pure-JAX reference matching nn.CrossEntropyLoss(ignore_index=255, 'mean')."""
    b, c, h, w = pred.shape
    logits = jnp.transpose(pred, (0, 2, 3, 1)).reshape(-1, c).astype(jnp.float32)
    labels = jnp.transpose(gt, (0, 2, 3, 1)).reshape(-1).astype(jnp.int32)
    valid = labels != IGNORE_INDEX
    safe = jnp.where(valid, labels, 0)
    logp = jax.nn.log_softmax(logits, axis=-1)
    nll = -jnp.take_along_axis(logp, safe[:, None], axis=-1)[:, 0]
    nll = jnp.where(valid, nll, 0.0)
    return jnp.sum(nll) / jnp.sum(valid.astype(jnp.float32))


if __name__ == "__main__":
    key = jax.random.PRNGKey(0)
    k1, k2, k3, k4, k5, k6 = jax.random.split(key, 6)

    # --- Test 1: small aligned case (single tile, no mask path) -------------
    B, C, H, W = 2, 8, 16, 16
    pred = jax.random.normal(k1, (B, C, H, W), dtype=jnp.float32)
    labels = jax.random.randint(k2, (B, 1, H, W), 0, C, dtype=jnp.int32)
    ignore_mask = jax.random.bernoulli(k3, 0.1, (B, 1, H, W))
    gt = jnp.where(ignore_mask, IGNORE_INDEX, labels)

    loss = deeplab_loss(pred, gt)
    jax.block_until_ready(loss)
    ref = _reference_loss(pred, gt)
    assert jnp.allclose(loss, ref, rtol=1e-5, atol=1e-5), (loss, ref)

    # --- Test 2: bf16 logits, non-128-multiple pixel count, odd block count,
    #             forced small tiles -> exercises core split, clamped duplicate
    #             block and the tail mask. ------------------------------------
    B2, C2, H2, W2 = 1, 8, 24, 24   # p = 576 (not a multiple of 128)
    pred2 = jax.random.normal(k4, (B2, C2, H2, W2), dtype=jnp.bfloat16)
    labels2 = jax.random.randint(k5, (B2, 1, H2, W2), 0, C2, dtype=jnp.int32)
    ignore_mask2 = jax.random.bernoulli(k6, 0.15, (B2, 1, H2, W2))
    gt2 = jnp.where(ignore_mask2, IGNORE_INDEX, labels2)

    loss2 = deeplab_loss(pred2, gt2, tile_pixels=128)
    jax.block_until_ready(loss2)
    ref2 = _reference_loss(pred2, gt2)
    assert jnp.allclose(loss2, ref2, rtol=1e-4, atol=1e-4), (loss2, ref2)

    print("KERNEL_OK")
</pallas_src>

<mosaic_0001>
module attributes {stable_mosaic.version = 11 : i64} {
  func.func @kernel(%arg0: i32, %arg1: i32, %arg2: i32, %arg3: memref<1x8x256xf32, #tpu.memory_space<vmem>>, %arg4: memref<1x1x256xi32, #tpu.memory_space<vmem>>, %arg5: memref<1x1x8x128xf32, #tpu.memory_space<vmem>>, %arg6: memref<1x1x8x128xf32, #tpu.memory_space<vmem>>, %arg7: memref<2x256xf32, #tpu.memory_space<vmem>>) attributes {dimension_semantics = [#tpu.dimension_semantics<parallel>, #tpu.dimension_semantics<parallel>, #tpu.dimension_semantics<arbitrary>], iteration_bounds = array<i64: 2, 1, 1>, scalar_prefetch = 0 : i64, scratch_operands = 1 : i64, tpu.core_type = #tpu.core_type<tc>, window_params = [{transform_indices = @transform_0, window_bounds = array<i64: 1, 8, 256>}, {transform_indices = @transform_1, window_bounds = array<i64: 1, 1, 256>}, {transform_indices = @transform_2, window_bounds = array<i64: 1, 1, 8, 128>}, {transform_indices = @transform_3, window_bounds = array<i64: 1, 1, 8, 128>}]} {
    %c0_i32 = arith.constant 0 : i32
    %0 = arith.cmpi eq, %arg2, %c0_i32 : i32
    %1 = arith.extui %0 : i1 to i32
    %c0_i32_0 = arith.constant 0 : i32
    %2 = arith.cmpi ne, %1, %c0_i32_0 : i32
    scf.if %2 {
      %cst_18 = arith.constant 0.000000e+00 : f32
      %43 = vector.broadcast %cst_18 : f32 to vector<2x256xf32>
      %c0_19 = arith.constant 0 : index
      %c0_20 = arith.constant 0 : index
      %44 = vector.load %arg7[%c0_19, %c0_20] : memref<2x256xf32, #tpu.memory_space<vmem>>, vector<2x256xf32>
      tpu.vector_store %arg7[%c0_19, %c0_20], %43 {strides = array<i32>} : memref<2x256xf32, #tpu.memory_space<vmem>>, vector<2x256xf32>,
    } else {
    }
    %c0 = arith.constant 0 : index
    %c0_1 = arith.constant 0 : index
    %c0_2 = arith.constant 0 : index
    %3 = vector.load %arg3[%c0, %c0_1, %c0_2] : memref<1x8x256xf32, #tpu.memory_space<vmem>>, vector<1x8x256xf32>
    %4 = vector.shape_cast %3 : vector<1x8x256xf32> to vector<8x256xf32>
    %c0_3 = arith.constant 0 : index
    %c0_4 = arith.constant 0 : index
    %c0_5 = arith.constant 0 : index
    %5 = vector.load %arg4[%c0_3, %c0_4, %c0_5] : memref<1x1x256xi32, #tpu.memory_space<vmem>>, vector<1x1x256xi32>
    %6 = vector.shape_cast %5 : vector<1x1x256xi32> to vector<1x256xi32>
    %cst = arith.constant dense<0xFF800000> : vector<256xf32>
    %7 = vector.multi_reduction <maximumf>, %4, %cst [0] : vector<8x256xf32> to vector<256xf32>
    %8 = vector.shape_cast %7 : vector<256xf32> to vector<1x256xf32>
    %9 = vector.broadcast %8 : vector<1x256xf32> to vector<8x256xf32>
    %10 = arith.subf %4, %9 : vector<8x256xf32>
    %11 = math.exp %10 : vector<8x256xf32>
    %cst_6 = arith.constant dense<0.000000e+00> : vector<256xf32>
    %12 = vector.multi_reduction <add>, %11, %cst_6 [0] : vector<8x256xf32> to vector<256xf32>
    %13 = vector.shape_cast %12 : vector<256xf32> to vector<1x256xf32>
    %14 = math.log %13 : vector<1x256xf32>
    %15 = arith.addf %8, %14 : vector<1x256xf32>
    %16 = tpu.iota {dimensions = array<i32: 0>} : vector<8x256xi32>
    %17 = vector.broadcast %6 : vector<1x256xi32> to vector<8x256xi32>
    %18 = arith.cmpi eq, %16, %17 : vector<8x256xi32>
    %cst_7 = arith.constant 0.000000e+00 : f32
    %19 = vector.broadcast %cst_7 : f32 to vector<8x256xf32>
    %20 = arith.select %18, %4, %19 : vector<8x256xi1>, vector<8x256xf32>
    %cst_8 = arith.constant dense<0.000000e+00> : vector<256xf32>
    %21 = vector.multi_reduction <add>, %20, %cst_8 [0] : vector<8x256xf32> to vector<256xf32>
    %22 = vector.shape_cast %21 : vector<256xf32> to vector<1x256xf32>
    %c255_i32 = arith.constant 255 : i32
    %23 = vector.broadcast %c255_i32 : i32 to vector<1x256xi32>
    %24 = arith.cmpi ne, %6, %23 : vector<1x256xi32>
    %25 = tpu.iota {dimensions = array<i32: 0>} : vector<2x256xi32>
    %c0_i32_9 = arith.constant 0 : i32
    %26 = vector.broadcast %c0_i32_9 : i32 to vector<2x256xi32>
    %27 = arith.cmpi eq, %25, %26 : vector<2x256xi32>
    %28 = arith.subf %15, %22 : vector<1x256xf32>
    %cst_10 = arith.constant 1.000000e+00 : f32
    %29 = vector.shape_cast %28 : vector<1x256xf32> to vector<1x256xf32>
    %30 = vector.broadcast %29 : vector<1x256xf32> to vector<2x256xf32>
    %31 = vector.broadcast %cst_10 : f32 to vector<2x256xf32>
    %32 = arith.select %27, %30, %31 : vector<2x256xi1>, vector<2x256xf32>
    %c0_11 = arith.constant 0 : index
    %c0_12 = arith.constant 0 : index
    %33 = vector.load %arg7[%c0_11, %c0_12] : memref<2x256xf32, #tpu.memory_space<vmem>>, vector<2x256xf32>
    %cst_13 = arith.constant 0.000000e+00 : f32
    %34 = vector.shape_cast %24 : vector<1x256xi1> to vector<1x256xi1>
    %35 = vector.broadcast %34 : vector<1x256xi1> to vector<2x256xi1>
    %36 = vector.broadcast %cst_13 : f32 to vector<2x256xf32>
    %37 = arith.select %35, %32, %36 : vector<2x256xi1>, vector<2x256xf32>
    %38 = arith.addf %33, %37 : vector<2x256xf32>
    %c0_14 = arith.constant 0 : index
    %c0_15 = arith.constant 0 : index
    %39 = vector.load %arg7[%c0_14, %c0_15] : memref<2x256xf32, #tpu.memory_space<vmem>>, vector<2x256xf32>
    tpu.vector_store %arg7[%c0_14, %c0_15], %38 {strides = array<i32>} : memref<2x256xf32, #tpu.memory_space<vmem>>, vector<2x256xf32>,
    %c0_i32_16 = arith.constant 0 : i32
    %40 = arith.cmpi eq, %arg2, %c0_i32_16 : i32
    %41 = arith.extui %40 : i1 to i32
    %c0_i32_17 = arith.constant 0 : i32
    %42 = arith.cmpi ne, %41, %c0_i32_17 : i32
    scf.if %42 {
      %c0_18 = arith.constant 0 : index
      %c0_19 = arith.constant 0 : index
      %43 = vector.load %arg7[%c0_18, %c0_19] : memref<2x256xf32, #tpu.memory_space<vmem>>, vector<2x256xf32>
      %44 = vector.extract_strided_slice %43 {offsets = [0, 0], sizes = [1, 256], strides = [1, 1]} : vector<2x256xf32> to vector<1x256xf32>
      %cst_20 = arith.constant dense<0.000000e+00> : vector<1xf32>
      %45 = vector.multi_reduction <add>, %44, %cst_20 [1] : vector<1x256xf32> to vector<1xf32>
      %46 = vector.shape_cast %45 : vector<1xf32> to vector<1x1xf32>
      %47 = vector.extract_strided_slice %43 {offsets = [1, 0], sizes = [1, 256], strides = [1, 1]} : vector<2x256xf32> to vector<1x256xf32>
      %cst_21 = arith.constant dense<0.000000e+00> : vector<1xf32>
      %48 = vector.multi_reduction <add>, %47, %cst_21 [1] : vector<1x256xf32> to vector<1xf32>
      %49 = vector.shape_cast %48 : vector<1xf32> to vector<1x1xf32>
      %50 = vector.shape_cast %46 : vector<1x1xf32> to vector<1x1x1x1xf32>
      %51 = vector.broadcast %50 : vector<1x1x1x1xf32> to vector<1x1x8x128xf32>
      %c0_22 = arith.constant 0 : index
      %c0_23 = arith.constant 0 : index
      %c0_24 = arith.constant 0 : index
      %c0_25 = arith.constant 0 : index
      %52 = vector.load %arg5[%c0_22, %c0_23, %c0_24, %c0_25] : memref<1x1x8x128xf32, #tpu.memory_space<vmem>>, vector<1x1x8x128xf32>
      tpu.vector_store %arg5[%c0_22, %c0_23, %c0_24, %c0_25], %51 {strides = array<i32>} : memref<1x1x8x128xf32, #tpu.memory_space<vmem>>, vector<1x1x8x128xf32>,
      %53 = vector.shape_cast %49 : vector<1x1xf32> to vector<1x1x1x1xf32>
      %54 = vector.broadcast %53 : vector<1x1x1x1xf32> to vector<1x1x8x128xf32>
      %c0_26 = arith.constant 0 : index
      %c0_27 = arith.constant 0 : index
      %c0_28 = arith.constant 0 : index
      %c0_29 = arith.constant 0 : index
      %55 = vector.load %arg6[%c0_26, %c0_27, %c0_28, %c0_29] : memref<1x1x8x128xf32, #tpu.memory_space<vmem>>, vector<1x1x8x128xf32>
      tpu.vector_store %arg6[%c0_26, %c0_27, %c0_28, %c0_29], %54 {strides = array<i32>} : memref<1x1x8x128xf32, #tpu.memory_space<vmem>>, vector<1x1x8x128xf32>,
    } else {
    }
    return
  }
  func.func @transform_0(%arg0: i32, %arg1: i32, %arg2: i32) -> (i32, i32, i32) {
    %c1_i32 = arith.constant 1 : i32
    %0 = arith.muli %arg1, %c1_i32 : i32
    %1 = arith.addi %0, %arg2 : i32
    %c0_i32 = arith.constant 0 : i32
    %2 = arith.minsi %1, %c0_i32 : i32
    %c0_i32_0 = arith.constant 0 : i32
    %c0_i32_1 = arith.constant 0 : i32
    return %arg0, %c0_i32_0, %2 : i32, i32, i32
  }
  func.func @transform_1(%arg0: i32, %arg1: i32, %arg2: i32) -> (i32, i32, i32) {
    %c1_i32 = arith.constant 1 : i32
    %0 = arith.muli %arg1, %c1_i32 : i32
    %1 = arith.addi %0, %arg2 : i32
    %c0_i32 = arith.constant 0 : i32
    %2 = arith.minsi %1, %c0_i32 : i32
    %c0_i32_0 = arith.constant 0 : i32
    %c0_i32_1 = arith.constant 0 : i32
    return %arg0, %c0_i32_0, %2 : i32, i32, i32
  }
  func.func @transform_2(%arg0: i32, %arg1: i32, %arg2: i32) -> (i32, i32, i32, i32) {
    %c0_i32 = arith.constant 0 : i32
    %c0_i32_0 = arith.constant 0 : i32
    %c0_i32_1 = arith.constant 0 : i32
    return %arg0, %arg1, %c0_i32, %c0_i32_0 : i32, i32, i32, i32
  }
  func.func @transform_3(%arg0: i32, %arg1: i32, %arg2: i32) -> (i32, i32, i32, i32) {
    %c0_i32 = arith.constant 0 : i32
    %c0_i32_0 = arith.constant 0 : i32
    %c0_i32_1 = arith.constant 0 : i32
    return %arg0, %arg1, %c0_i32, %c0_i32_0 : i32, i32, i32, i32
  }
}

</mosaic_0001>

<llo_original>
// kernel: deeplab_loss.1
$region0: #{deeplab_loss.1}
  #allocation0 [shape = 'u32[]', space=smem, size = 0x4, offset = 0x4, fixed_abs, tag = 'smem constant byte address 0x4 - core index']
  #allocation1 [shape = 'u32[144,128]{1,0:T(1,128)}', space=vmem, size = 0x12000, scoped, tag = 'internal scratch']
  #allocation2 [shape = 'f32[2,256]{1,0:T(2,128)}', space=vmem, size = 0x800, scoped, tag = 'scratch operand']
  %s0 = inlined_call_operand.vmem [shape: f32[2,8,256], index: 0, kind: input, shape index: {}]
  %s1 = inlined_call_operand.vmem [shape: s32[2,1,256], index: 1, kind: input, shape index: {}]
  %s2 = inlined_call_operand.vmem [shape: f32[2,1,8,128], index: 2, kind: output, shape index: {0}]
  %s3 = inlined_call_operand.vmem [shape: f32[2,1,8,128], index: 3, kind: output, shape index: {1}]
  %4 = xla_tuple %s2, %s3
  %s5 = sld [smem:[#allocation0]]
  $region57: #{deeplab_loss.1} parent=0
    _
  %s7 = ssub.s32 1, %s5
  %s8 = scalar_select 0, %s7, %s5
  loop: start=0, step=1, limit=4
  $region2: #{deeplab_loss.1} parent=0 // loop_pre_header
    _
  $region3: #{deeplab_loss.1} parent=0 // loop_header
    %s10 = sphi 0, %s14
    %p11 = scmp.ge.s32.totalorder %s10, 4
    %s17 = sphi 0, %s36
    %s18 = sphi 0, %s32
    %s19 = sphi 0, %s28
    %s20 = sphi 0, %s17
    %s21 = sphi 0, %s18
    %s22 = sphi 0, %s19
    %s23 = sphi 0, %s20
    %s24 = sphi 0, %s21
    %s25 = sphi 0, %s22
    %s47 = sphi 0, %s49
    %s50 = sphi 0, %s47
    %s51 = sphi 0, %s50
    %s67 = sphi 0, %s51
    %s81 = sphi 0, %s83
    %s84 = sphi 0, %s81
    %s85 = sphi 0, %s84
    %s101 = sphi 0, %s85
    %s109 = sphi 0, %s111
    %s112 = sphi 0, %s109
    %s113 = sphi 0, %s112
    %s129 = sphi 0, %s113
    %s137 = sphi 0, %s139
    %s140 = sphi 0, %s137
    %s141 = sphi 0, %s140
    %s157 = sphi 0, %s141
  $region4: #{deeplab_loss.1} parent=0 // loop_header_branch
    %13 = sbr.rel (%p11) target = $region8
  $region5: #{deeplab_loss.1} parent=0 // loop_body
    %s15 = ssub.s32 %s10, 1
    %s16 = ssub.s32 %s10, 2
    %s26 = sadd.s32 1, %s19
    %p27 = scmp.ge.s32.totalorder %s26, 1
    %s28 = scalar_select %p27, 0, %s26
    %s29 = sadd.s32 1, %s18
    %s30 = scalar_select %p27, %s29, %s18
    %p31 = scmp.ge.s32.totalorder %s30, 1
    %s32 = scalar_select %p31, 0, %s30
    %s33 = sadd.s32 1, %s17
    %s34 = scalar_select %p31, %s33, %s17
    %p35 = scmp.ge.s32.totalorder %s34, 2
    %s36 = scalar_select %p35, 0, %s34
    %s37 = sadd.s32 %s18, %s19
    %p38 = scmp.lt.s32.totalorder %s37, 0
    %s39 = scalar_select %p38, %s37, 0
    %s40 = sadd.s32 %s32, %s28
    %p41 = scmp.lt.s32.totalorder %s40, 0
    %s42 = scalar_select %p41, %s40, 0
    %s43 = ssub.s32 %s17, %s36
    %s44 = ssub.s32 %s39, %s42
    %s45 = sor.u32 %s43, %s44
    %p46 = scmp.eq.s32.totalorder %s45, 0
    %s48 = sadd.s32 %s47, 1
    %s49 = scalar_select %p46, %s47, %s48
    %p52 = pneg %p46
    %p53 = scmp.eq.s32.totalorder %s10, 1
    %p54 = por %p52, %p53
    %p55 = scmp.ne.s32.totalorder %s47, %s50
    %p56 = scmp.eq.s32.totalorder %s10, 0
    %p57 = por %p55, %p56
    %p58 = scmp.ne.s32.totalorder %s47, %s50
    %p59 = scmp.eq.s32.totalorder %s15, 1
    %p60 = por %p58, %p59
    %p61 = scmp.ne.s32.totalorder %s50, %s51
    %p62 = scmp.eq.s32.totalorder %s15, 0
    %p63 = por %p61, %p62
    %p64 = scmp.ne.s32.totalorder %s50, %s51
    %p65 = scmp.eq.s32.totalorder %s16, 1
    %p66 = por %p64, %p65
    %p68 = scmp.ne.s32.totalorder %s51, %s67
    %p69 = scmp.eq.s32.totalorder %s16, 0
    %p70 = por %p68, %p69
    %s71 = sadd.s32 %s18, %s19
    %p72 = scmp.lt.s32.totalorder %s71, 0
    %s73 = scalar_select %p72, %s71, 0
    %s74 = sadd.s32 %s32, %s28
    %p75 = scmp.lt.s32.totalorder %s74, 0
    %s76 = scalar_select %p75, %s74, 0
    %s77 = ssub.s32 %s17, %s36
    %s78 = ssub.s32 %s73, %s76
    %s79 = sor.u32 %s77, %s78
    %p80 = scmp.eq.s32.totalorder %s79, 0
    %s82 = sadd.s32 %s81, 1
    %s83 = scalar_select %p80, %s81, %s82
    %p86 = pneg %p80
    %p87 = scmp.eq.s32.totalorder %s10, 1
    %p88 = por %p86, %p87
    %p89 = scmp.ne.s32.totalorder %s81, %s84
    %p90 = scmp.eq.s32.totalorder %s10, 0
    %p91 = por %p89, %p90
    %p92 = scmp.ne.s32.totalorder %s81, %s84
    %p93 = scmp.eq.s32.totalorder %s15, 1
    %p94 = por %p92, %p93
    %p95 = scmp.ne.s32.totalorder %s84, %s85
    %p96 = scmp.eq.s32.totalorder %s15, 0
    %p97 = por %p95, %p96
    %p98 = scmp.ne.s32.totalorder %s84, %s85
    %p99 = scmp.eq.s32.totalorder %s16, 1
    %p100 = por %p98, %p99
    %p102 = scmp.ne.s32.totalorder %s85, %s101
    %p103 = scmp.eq.s32.totalorder %s16, 0
    %p104 = por %p102, %p103
    %s105 = ssub.s32 %s17, %s36
    %s106 = ssub.s32 %s18, %s32
    %s107 = sor.u32 %s105, %s106
    %p108 = scmp.eq.s32.totalorder %s107, 0
    %s110 = sadd.s32 %s109, 1
    %s111 = scalar_select %p108, %s109, %s110
    %p114 = pneg %p108
    %p115 = scmp.eq.s32.totalorder %s10, 1
    %p116 = por %p114, %p115
    %p117 = scmp.ne.s32.totalorder %s109, %s112
    %p118 = scmp.eq.s32.totalorder %s10, 0
    %p119 = por %p117, %p118
    %p120 = scmp.ne.s32.totalorder %s109, %s112
    %p121 = scmp.eq.s32.totalorder %s15, 1
    %p122 = por %p120, %p121
    %p123 = scmp.ne.s32.totalorder %s112, %s113
    %p124 = scmp.eq.s32.totalorder %s15, 0
    %p125 = por %p123, %p124
    %p126 = scmp.ne.s32.totalorder %s112, %s113
    %p127 = scmp.eq.s32.totalorder %s16, 1
    %p128 = por %p126, %p127
    %p130 = scmp.ne.s32.totalorder %s113, %s129
    %p131 = scmp.eq.s32.totalorder %s16, 0
    %p132 = por %p130, %p131
    %s133 = ssub.s32 %s17, %s36
    %s134 = ssub.s32 %s18, %s32
    %s135 = sor.u32 %s133, %s134
    %p136 = scmp.eq.s32.totalorder %s135, 0
    %s138 = sadd.s32 %s137, 1
    %s139 = scalar_select %p136, %s137, %s138
    %p142 = pneg %p136
    %p143 = scmp.eq.s32.totalorder %s10, 1
    %p144 = por %p142, %p143
    %p145 = scmp.ne.s32.totalorder %s137, %s140
    %p146 = scmp.eq.s32.totalorder %s10, 0
    %p147 = por %p145, %p146
    %p148 = scmp.ne.s32.totalorder %s137, %s140
    %p149 = scmp.eq.s32.totalorder %s15, 1
    %p150 = por %p148, %p149
    %p151 = scmp.ne.s32.totalorder %s140, %s141
    %p152 = scmp.eq.s32.totalorder %s15, 0
    %p153 = por %p151, %p152
    %p154 = scmp.ne.s32.totalorder %s140, %s141
    %p155 = scmp.eq.s32.totalorder %s16, 1
    %p156 = por %p154, %p155
    %p158 = scmp.ne.s32.totalorder %s141, %s157
    %p159 = scmp.eq.s32.totalorder %s16, 0
    %p160 = por %p158, %p159
    %p161 = scmp.le.s32.totalorder 1, %s10
    %p162 = scmp.lt.s32.totalorder %s10, 3
    %p163 = pnand %p161, %p162
    %p164 = pneg %p163
    // Predicated region
    $region9: #{deeplab_loss.1} parent=5 // pred_check
      _
    $region10: #{deeplab_loss.1} parent=5 // pred_check_branch
      %166 = sbr.rel (%p163) target = $region12
    $region11: #{deeplab_loss.1} parent=5 // pred_region
      %s167 = ssub.s32 %s10, 1
    $region12: #{deeplab_loss.1} parent=5 // pred_fallthru
      _
    %p168 = scmp.lt.s32.totalorder %s10, 2
    // Predicated region
    $region13: #{deeplab_loss.1} parent=5 // pred_check
      %p169 = pneg %p168
    $region14: #{deeplab_loss.1} parent=5 // pred_check_branch
      %171 = sbr.rel (%p169) target = $region16
    $region15: #{deeplab_loss.1} parent=5 // pred_region
      // Predicated region
      $region17: #{deeplab_loss.1} parent=15 // pred_check
        %p172 = pneg %p57
      $region18: #{deeplab_loss.1} parent=15 // pred_check_branch
        %174 = sbr.rel (%p172) target = $region20
      $region19: #{deeplab_loss.1} parent=15 // pred_region
        %s175 = sadd.s32 %s18, %s19
        %p176 = scmp.lt.s32.totalorder %s175, 0
        %s177 = scalar_select %p176, %s175, 0
        %s178 = smul.u32 2, %s177
        %p179 = scmp.lt.s32.totalorder %s17, 1
        %s180 = scalar_select %p179, %s17, 1
        %p181 = scmp.lt.s32.totalorder %s178, 1
        %s182 = scalar_select %p181, %s178, 1
        %s183 = smul.addr %s180, 2
        %s184 = sadd.s32 %s182, %s183
        %s185 = smul.addr %s184, 8
        %s186 = scalar_lea.vmem %s0, %s185
        %s187 = sadd.s32 %s18, %s19
        %p188 = scmp.lt.s32.totalorder %s187, 0
        %s189 = scalar_select %p188, %s187, 0
        %s190 = smul.u32 2, %s189
      $region20: #{deeplab_loss.1} parent=15 // pred_fallthru
        _
      // Predicated region
      $region21: #{deeplab_loss.1} parent=15 // pred_check
        %p191 = pneg %p91
      $region22: #{deeplab_loss.1} parent=15 // pred_check_branch
        %193 = sbr.rel (%p191) target = $region24
      $region23: #{deeplab_loss.1} parent=15 // pred_region
        %s194 = sadd.s32 %s18, %s19
        %p195 = scmp.lt.s32.totalorder %s194, 0
        %s196 = scalar_select %p195, %s194, 0
        %s197 = smul.u32 2, %s196
        %p198 = scmp.lt.s32.totalorder %s17, 1
        %s199 = scalar_select %p198, %s17, 1
        %p200 = scmp.lt.s32.totalorder %s197, 1
        %s201 = scalar_select %p200, %s197, 1
        %s202 = smul.addr %s199, 2
        %s203 = sadd.s32 %s201, %s202
        %s204 = scalar_lea.vmem %s1, %s203
        %s205 = sadd.s32 %s18, %s19
        %p206 = scmp.lt.s32.totalorder %s205, 0
        %s207 = scalar_select %p206, %s205, 0
        %s208 = smul.u32 2, %s207
      $region24: #{deeplab_loss.1} parent=15 // pred_fallthru
        _
    $region16: #{deeplab_loss.1} parent=5 // pred_fallthru
      _
    %p209 = scmp.le.s32.totalorder 1, %s10
    %p210 = scmp.lt.s32.totalorder %s10, 3
    %p211 = pnand %p209, %p210
    %p212 = pneg %p211
    // Predicated region
    $region25: #{deeplab_loss.1} parent=5 // pred_check
      _
    $region26: #{deeplab_loss.1} parent=5 // pred_check_branch
      %214 = sbr.rel (%p211) target = $region28
    $region27: #{deeplab_loss.1} parent=5 // pred_region
      %s215 = ssub.s32 %s10, 1
      %s216 = sadd.s32 %s21, %s22
      %p217 = scmp.lt.s32.totalorder %s216, 0
      %s218 = scalar_select %p217, %s216, 0
      %s219 = smul.u32 2, %s218
      %p220 = scmp.lt.s32.totalorder %s20, 1
      %s221 = scalar_select %p220, %s20, 1
      %p222 = scmp.lt.s32.totalorder %s219, 1
      %s223 = scalar_select %p222, %s219, 1
      %s224 = smul.addr %s221, 2
      %s225 = sadd.s32 %s223, %s224
      %s226 = smul.addr %s225, 8
      %s227 = scalar_lea.vmem %s0, %s226
      %p228 = pneg %p63
      %p229 = pneg %p60
      %s230 = sadd.s32 %s21, %s22
      %p231 = scmp.lt.s32.totalorder %s230, 0
      %s232 = scalar_select %p231, %s230, 0
      %s233 = smul.u32 2, %s232
      %p234 = scmp.lt.s32.totalorder %s20, 1
      %s235 = scalar_select %p234, %s20, 1
      %p236 = scmp.lt.s32.totalorder %s233, 1
      %s237 = scalar_select %p236, %s233, 1
      %s238 = smul.addr %s235, 2
      %s239 = sadd.s32 %s237, %s238
      %s240 = scalar_lea.vmem %s1, %s239
      %p241 = pneg %p97
      %p242 = pneg %p94
      %p243 = pneg %p125
      %p244 = pneg %p122
      %p245 = scmp.lt.s32.totalorder %s20, 1
      %s246 = scalar_select %p245, %s20, 1
      %p247 = scmp.lt.s32.totalorder %s21, 0
      %s248 = scalar_select %p247, %s21, 0
      %s249 = sadd.s32 %s248, %s246
      %s250 = smul.addr %s249, 8
      %s251 = scalar_lea.vmem %s2, %s250
      %p252 = pneg %p153
      %p253 = pneg %p150
      %p254 = scmp.lt.s32.totalorder %s20, 1
      %s255 = scalar_select %p254, %s20, 1
      %p256 = scmp.lt.s32.totalorder %s21, 0
      %s257 = scalar_select %p256, %s21, 0
      %s258 = sadd.s32 %s257, %s255
      %s259 = smul.addr %s258, 8
      %s260 = scalar_lea.vmem %s3, %s259
      %s261 = sadd.s32 %s21, %s22
      %p262 = scmp.lt.s32.totalorder %s261, 0
      %s263 = scalar_select %p262, %s261, 0
      %s264 = smul.u32 2, %s263
      %p265 = scmp.lt.s32.totalorder %s20, 1
      %s266 = scalar_select %p265, %s20, 1
      %p267 = scmp.lt.s32.totalorder %s264, 1
      %s268 = scalar_select %p267, %s264, 1
      %s269 = smul.addr %s266, 2
      %s270 = sadd.s32 %s268, %s269
      %s271 = smul.addr %s270, 8
      %s272 = scalar_lea.vmem %s0, %s271
      %s273 = sadd.s32 %s21, %s22
      %p274 = scmp.lt.s32.totalorder %s273, 0
      %s275 = scalar_select %p274, %s273, 0
      %s276 = smul.u32 2, %s275
      %s277 = sadd.s32 %s21, %s22
      %p278 = scmp.lt.s32.totalorder %s277, 0
      %s279 = scalar_select %p278, %s277, 0
      %s280 = smul.u32 2, %s279
      %p281 = scmp.lt.s32.totalorder %s20, 1
      %s282 = scalar_select %p281, %s20, 1
      %p283 = scmp.lt.s32.totalorder %s280, 1
      %s284 = scalar_select %p283, %s280, 1
      %s285 = smul.addr %s282, 2
      %s286 = sadd.s32 %s284, %s285
      %s287 = scalar_lea.vmem %s1, %s286
      %s288 = sadd.s32 %s21, %s22
      %p289 = scmp.lt.s32.totalorder %s288, 0
      %s290 = scalar_select %p289, %s288, 0
      %s291 = smul.u32 2, %s290
      %p292 = scmp.lt.s32.totalorder %s20, 1
      %s293 = scalar_select %p292, %s20, 1
      %p294 = scmp.lt.s32.totalorder %s21, 0
      %s295 = scalar_select %p294, %s21, 0
      %s296 = sadd.s32 %s295, %s293
      %s297 = smul.addr %s296, 8
      %s298 = scalar_lea.vmem %s2, %s297
      %p299 = scmp.lt.s32.totalorder %s20, 1
      %s300 = scalar_select %p299, %s20, 1
      %p301 = scmp.lt.s32.totalorder %s21, 0
      %s302 = scalar_select %p301, %s21, 0
      %s303 = sadd.s32 %s302, %s300
      %s304 = smul.addr %s303, 8
      %s305 = scalar_lea.vmem %s3, %s304
      %p306 = scmp.eq.s32.totalorder %s22, 0
      // Predicated region
      $region29: #{deeplab_loss.1} parent=27 // pred_check
        %p307 = pneg %p306
      $region30: #{deeplab_loss.1} parent=27 // pred_check_branch
        %309 = sbr.rel (%p307) target = $region32
      $region31: #{deeplab_loss.1} parent=27 // pred_region
        %310 = vst [vmem:[#allocation2] sm:$0xf] 0.0
      $region32: #{deeplab_loss.1} parent=27 // pred_fallthru
        _
      %v311 = vld [vmem:[%s272] sm:$0xff]
      %v312 = vld [vmem:[%s272 + $0x8] sm:$0xff]
      %v313 = vld [vmem:[%s287] sm:$0x3]
      %v314 = vrot.slane %v311, 4
      %v315 = vmax.f32 %v311, %v314
      %v316 = vrot.slane %v315, 2
      %v317 = vmax.f32 %v315, %v316
      %v318 = vrot.slane %v317, 1
      %v319 = vmax.f32 %v317, %v318
      %v320 = vrot.slane %v312, 4
      %v321 = vmax.f32 %v312, %v320
      %v322 = vrot.slane %v321, 2
      %v323 = vmax.f32 %v321, %v322
      %v324 = vrot.slane %v323, 1
      %v325 = vmax.f32 %v323, %v324
      %v326 = vsub.f32 %v311, %v319
      %v327 = vsub.f32 %v312, %v325
      %v328 = vmul.f32 %v326, 1.442695
      %v329 = vpow.pop %v328
      %v330 = vmul.f32 %v327, 1.442695
      %v331 = vpow.pop %v330
      %v332 = vrot.slane %v329, 4
      %v333 = vadd.f32 %v329, %v332
      %v334 = vrot.slane %v333, 2
      %v335 = vadd.f32 %v333, %v334
      %v336 = vrot.slane %v335, 1
      %v337 = vadd.f32 %v335, %v336
      %v338 = vrot.slane %v331, 4
      %v339 = vadd.f32 %v331, %v338
      %v340 = vrot.slane %v339, 2
      %v341 = vadd.f32 %v339, %v340
      %v342 = vrot.slane %v341, 1
      %v343 = vadd.f32 %v341, %v342
      %v344 = vlog2.pop %v337
      %v345 = vmul.f32 %v344, 0.6931472
      %v346 = vlog2.pop %v343
      %v347 = vmul.f32 %v346, 0.6931472
      %v348 = vadd.f32 %v319, %v345
      %v349 = vadd.f32 %v325, %v347
      %v350 = vlaneseq
      %v351 = vshrl.u32 %v350, 7
      %v352 = vlaneseq
      %v353 = vshrl.u32 %v352, 7
      %v354 = vsub.s32 0, %v353
      %v355 = vrot.slane %v313, %v354
      %v356 = vlaneseq
      %v357 = vshrl.u32 %v356, 7
      %v358 = vsub.s32 1, %v357
      %v359 = vrot.slane %v313, %v358
      %vm360 = vcmp.eq.s32.totalorder %v351, %v355
      %vm361 = vcmp.eq.s32.totalorder %v351, %v359
      %v362 = vsel %vm360, %v311, 0.0
      %v363 = vsel %vm361, %v312, 0.0
      %v364 = vrot.slane %v362, 4
      %v365 = vadd.f32 %v362, %v364
      %v366 = vrot.slane %v365, 2
      %v367 = vadd.f32 %v365, %v366
      %v368 = vrot.slane %v367, 1
      %v369 = vadd.f32 %v367, %v368
      %v370 = vrot.slane %v363, 4
      %v371 = vadd.f32 %v363, %v370
      %v372 = vrot.slane %v371, 2
      %v373 = vadd.f32 %v371, %v372
      %v374 = vrot.slane %v373, 1
      %v375 = vadd.f32 %v373, %v374
      %vm376 = vcmp.ne.s32.totalorder %v313, 255
      %vm377 = vcmp.eq.s32.totalorder %v351, 0
      %v378 = vsub.f32 %v348, %v369
      %v379 = vsub.f32 %v349, %v375
      %v380 = vsel %vm377, %v378, 1.0
      %v381 = vsel %vm377, %v379, 1.0
      %v382 = vld [vmem:[#allocation2] sm:$0xf]
      %v383 = vsel %vm376, 1, 0
      %v384 = vlaneseq
      %v385 = vshrl.u32 %v384, 7
      %v386 = vsub.s32 0, %v385
      %v387 = vrot.slane %v383, %v386
      %v388 = vlaneseq
      %v389 = vshrl.u32 %v388, 7
      %v390 = vsub.s32 1, %v389
      %v391 = vrot.slane %v383, %v390
      %vm392 = vcmp.eq.s32.totalorder %v387, 1
      %vm393 = vcmp.eq.s32.totalorder %v391, 1
      %v394 = vsel %vm392, %v380, 0.0
      %v395 = vsel %vm393, %v381, 0.0
      %v398 = vcombine.low %v394, %v395
      %v400 = vunpack.c.l.s4 1983009808
      %v401 = vunpack.c.0.s8 %v400
      %v402 = vlaneseq
      %v403 = vshrl.u32 %v402, 7
      %v404 = vsub.s32 %v401, %v403
      %v405 = vrot.slane %v398, %v404
      %v407 = vadd.f32 %v382, %v405
      %408 = vst [vmem:[#allocation2] sm:$0xf] %v407
      // Predicated region
      $region33: #{deeplab_loss.1} parent=27 // pred_check
        %p409 = pneg %p306
      $region34: #{deeplab_loss.1} parent=27 // pred_check_branch
        %411 = sbr.rel (%p409) target = $region36
      $region35: #{deeplab_loss.1} parent=27 // pred_region
        %v412 = vld [vmem:[#allocation2] sm:$0xf]
        %v414 = vlaneseq
        %v415 = vshrl.u32 %v414, 7
        %v416 = vsub.s32 0, %v415
        %v417 = vrot.slane %v412, %v416
        %v418 = vlaneseq
        %v419 = vshrl.u32 %v418, 7
        %v420 = vsub.s32 2, %v419
        %v421 = vrot.slane %v412, %v420
        %vm424 = vcmask 1040384
        %v425 = vsel %vm424, %v417, 0.0
        %v426 = vsel %vm424, %v421, 0.0
        %v427 = vadd.f32 %v425, %v426
        %428 = vadd.xlane.f32.xlu0 %v427
        %v429 = vpop.xlane.xlu0 %428
        %v430 = vlaneseq
        %v431 = vshrl.u32 %v430, 7
        %v432 = vsub.s32 1, %v431
        %v433 = vrot.slane %v412, %v432
        %v434 = vlaneseq
        %v435 = vshrl.u32 %v434, 7
        %v436 = vsub.s32 3, %v435
        %v437 = vrot.slane %v412, %v436
        %vm440 = vcmask 1041409
        %v441 = vsel %vm440, %v433, 0.0
        %v442 = vsel %vm440, %v437, 0.0
        %v443 = vadd.f32 %v441, %v442
        %444 = vadd.xlane.f32.xlu0 %v443
        %v445 = vpop.xlane.xlu0 %444
        %v446 = vlaneseq
        %v447 = vshrl.u32 %v446, 7
        %v448 = vsub.s32 0, %v447
        %v449 = vrot.slane %v429, %v448
        %450 = vst [vmem:[%s298] sm:$0xff] %v449
        %v451 = vlaneseq
        %v452 = vshrl.u32 %v451, 7
        %v453 = vsub.s32 1, %v452
        %v454 = vrot.slane %v445, %v453
        %455 = vst [vmem:[%s305] sm:$0xff] %v454
      $region36: #{deeplab_loss.1} parent=27 // pred_fallthru
        _
      %p456 = scmp.lt.s32.totalorder %s20, 1
      %s457 = scalar_select %p456, %s20, 1
      %p458 = scmp.lt.s32.totalorder %s21, 0
      %s459 = scalar_select %p458, %s21, 0
      %s460 = sadd.s32 %s459, %s457
      %s461 = smul.addr %s460, 8
      %s462 = scalar_lea.vmem %s2, %s461
      %p463 = scmp.lt.s32.totalorder %s20, 1
      %s464 = scalar_select %p463, %s20, 1
      %p465 = scmp.lt.s32.totalorder %s21, 0
      %s466 = scalar_select %p465, %s21, 0
      %s467 = sadd.s32 %s466, %s464
      %s468 = smul.addr %s467, 8
      %s469 = scalar_lea.vmem %s3, %s468
      // Predicated region
      $region37: #{deeplab_loss.1} parent=27 // pred_check
        %p470 = pneg %p122
      $region38: #{deeplab_loss.1} parent=27 // pred_check_branch
        %472 = sbr.rel (%p470) target = $region40
      $region39: #{deeplab_loss.1} parent=27 // pred_region
        _
      $region40: #{deeplab_loss.1} parent=27 // pred_fallthru
        _
      // Predicated region
      $region41: #{deeplab_loss.1} parent=27 // pred_check
        %p473 = pneg %p150
      $region42: #{deeplab_loss.1} parent=27 // pred_check_branch
        %475 = sbr.rel (%p473) target = $region44
      $region43: #{deeplab_loss.1} parent=27 // pred_region
        _
      $region44: #{deeplab_loss.1} parent=27 // pred_fallthru
        _
    $region28: #{deeplab_loss.1} parent=5 // pred_fallthru
      _
    %p476 = scmp.le.s32.totalorder 2, %s10
    // Predicated region
    $region45: #{deeplab_loss.1} parent=5 // pred_check
      %p477 = pneg %p476
    $region46: #{deeplab_loss.1} parent=5 // pred_check_branch
      %479 = sbr.rel (%p477) target = $region48
    $region47: #{deeplab_loss.1} parent=5 // pred_region
      %s480 = ssub.s32 %s10, 2
      // Predicated region
      $region49: #{deeplab_loss.1} parent=47 // pred_check
        %p481 = pneg %p128
      $region50: #{deeplab_loss.1} parent=47 // pred_check_branch
        %483 = sbr.rel (%p481) target = $region52
      $region51: #{deeplab_loss.1} parent=47 // pred_region
        %p484 = scmp.lt.s32.totalorder %s23, 1
        %s485 = scalar_select %p484, %s23, 1
        %p486 = scmp.lt.s32.totalorder %s24, 0
        %s487 = scalar_select %p486, %s24, 0
        %s488 = sadd.s32 %s487, %s485
        %s489 = smul.addr %s488, 8
        %s490 = scalar_lea.vmem %s2, %s489
      $region52: #{deeplab_loss.1} parent=47 // pred_fallthru
        _
      // Predicated region
      $region53: #{deeplab_loss.1} parent=47 // pred_check
        %p491 = pneg %p156
      $region54: #{deeplab_loss.1} parent=47 // pred_check_branch
        %493 = sbr.rel (%p491) target = $region56
      $region55: #{deeplab_loss.1} parent=47 // pred_region
        %p494 = scmp.lt.s32.totalorder %s23, 1
        %s495 = scalar_select %p494, %s23, 1
        %p496 = scmp.lt.s32.totalorder %s24, 0
        %s497 = scalar_select %p496, %s24, 0
        %s498 = sadd.s32 %s497, %s495
        %s499 = smul.addr %s498, 8
        %s500 = scalar_lea.vmem %s3, %s499
      $region56: #{deeplab_loss.1} parent=47 // pred_fallthru
        _
    $region48: #{deeplab_loss.1} parent=5 // pred_fallthru
      _
  $region6: #{deeplab_loss.1} parent=0 // loop_footer
    %s14 = sadd.s32 1, %s10
  $region7: #{deeplab_loss.1} parent=0 // loop_footer_branch
    %9 = sbr.rel target = $region3
  $region8: #{deeplab_loss.1} parent=0 // loop_exit
    _

</llo_original>
